<compile_context>
chip_gen: v7x
topology: tpu7x:2x2x1
jax: 0.10.0
libtpu: 0.0.40
codegen_flags: <defaults>
</compile_context>

<pallas_src>
import functools

import jax
import jax.numpy as jnp
from jax.experimental import pallas as pl
from jax.experimental.pallas import tpu as pltpu


# ----------------------------------------------------------------------------
# Fused kernel: backbone tile matmul + ReLU -> pool accumulation -> head
# ----------------------------------------------------------------------------
def _fused_kernel(x_ref, bbw_ref, bbb_ref, emb_ref,
                  w1f_ref, w1e_ref, b1_ref, w2_ref, b2_ref, w3_ref, b3_ref,
                  out_ref, acc_ref, *, s_total, inv_spatial, needs_mask):
    s = pl.program_id(1)
    ns = pl.num_programs(1)

    # ---- init pool accumulator at the first spatial tile of this batch ----
    @pl.when(s == 0)
    def _():
        acc_ref[...] = jnp.zeros_like(acc_ref)

    x_tile = x_ref[0]                                # (ts, C) f32
    ts = x_tile.shape[0]
    F = acc_ref.shape[1]

    # ---- backbone stand-in: 1x1 conv == matmul (K=4 contraction is MXU-padded
    #      anyway; f32 in / f32 accumulate keeps PyTorch-f32 semantics) ----
    y = jnp.dot(x_tile, bbw_ref[...], preferred_element_type=jnp.float32)   # (ts, F)
    y = jnp.maximum(y + bbb_ref[...], 0.0)           # bias + ReLU (VPU)

    # ---- masked tail for non-divisible spatial extents ----
    if needs_mask:
        row = jax.lax.broadcasted_iota(jnp.int32, (ts, 1), 0) + s * ts
        y = jnp.where(row < s_total, y, 0.0)

    # ---- fused AdaptiveAvgPool2d(1): partial sum into (8, F) accumulator.
    #      Pure vreg adds (VALU); no per-tile cross-sublane reduce. ----
    acc_ref[...] += jnp.sum(y.reshape(ts // 8, 8, F), axis=0)

    # ---- regression head: only on the last spatial tile of this batch ----
    @pl.when(s == ns - 1)
    def _():
        pooled = jnp.sum(acc_ref[...], axis=0, keepdims=True) * inv_spatial  # (1, F)
        emb = emb_ref[0]                                                     # (1, E)
        # cat([pooled, emb], dim=1) @ W1  ==  pooled @ W1f + emb @ W1e
        h1 = (jnp.dot(pooled, w1f_ref[...], preferred_element_type=jnp.float32)
              + jnp.dot(emb, w1e_ref[...], preferred_element_type=jnp.float32)
              + b1_ref[...])
        h1 = jnp.maximum(h1, 0.0)
        # TODO(synk): Dropout(0.3)/Dropout(0.2) omitted (inference -> identity).
        h2 = jnp.dot(h1, w2_ref[...], preferred_element_type=jnp.float32) + b2_ref[...]
        h2 = jnp.maximum(h2, 0.0)
        out_ref[0] = (jnp.dot(h2, w3_ref[...], preferred_element_type=jnp.float32)
                      + b3_ref[...])                                         # (1, 2)


# ----------------------------------------------------------------------------
# Tiling helpers (generation / VMEM aware)
# ----------------------------------------------------------------------------
def _round_up(x, m):
    return ((x + m - 1) // m) * m


def _vmem_limit_bytes():
    try:
        cap = pltpu.get_tpu_info().vmem_capacity_bytes
    except Exception:
        cap = 64 * 1024 * 1024   # conservative (v7x-sized) default
    # v5e/v6e (128 MiB physical) -> 64 MiB scoped; v7x (64 MiB) -> 32 MiB.
    return min(64 * 1024 * 1024, max(32 * 1024 * 1024, cap // 2))


def _pick_spatial_tile(S, F, vmem_limit_bytes, override=None):
    if override is not None:
        ts = int(override)
    else:
        # Per-row VMEM cost of one spatial tile:
        #   x block (f32, lane-padded to 128) x2 double-buffered
        # + (ts, F) f32 post-conv intermediate (x3 headroom for temps).
        per_row = 2 * 128 * 4 + 3 * F * 4
        ts = (vmem_limit_bytes // 2) // per_row
        ts = min(ts, 8192)
    ts = min(ts, _round_up(S, 8))          # never bigger than the (padded) extent
    ts = max(8, (ts // 8) * 8)             # sublane-aligned
    return ts


# ----------------------------------------------------------------------------
# Wrapper: one fused pallas_call
# ----------------------------------------------------------------------------
def angle_predictor_forward(x_nhwc, region_id, params, *, spatial_tile=None):
    """Fused AnglePredictor forward.

    x_nhwc: (B, H, W, C) float32, channels-last.
    region_id: (B,) int32
    Returns: (B, 2) float32.
    """
    B, H, W, C = x_nhwc.shape
    S = H * W
    bb_w, bb_b = params["bb_w"], params["bb_b"]
    F = bb_w.shape[1]
    E = params["emb_table"].shape[1]

    vmem_limit = _vmem_limit_bytes()
    ts = _pick_spatial_tile(S, F, vmem_limit, spatial_tile)
    ns = pl.cdiv(S, ts)
    needs_mask = (S % ts) != 0

    # Metadata-only reshape; x stays f32 in HBM (no wrapper cast pass).
    x_bsc = x_nhwc.reshape(B, S, C)

    # Embedding gather stays in plain JAX (tiny, data-dependent).
    region_embed = jnp.take(params["emb_table"], region_id, axis=0).reshape(B, 1, E)

    w1f, w1e, b1 = params["w1f"], params["w1e"], params["b1"]
    w2, b2 = params["w2"], params["b2"]
    w3, b3 = params["w3"], params["b3"]

    kernel = functools.partial(_fused_kernel, s_total=S,
                               inv_spatial=1.0 / S, needs_mask=needs_mask)

    out = pl.pallas_call(
        kernel,
        out_shape=jax.ShapeDtypeStruct((B, 1, 2), jnp.float32),
        grid=(B, ns),
        in_specs=[
            pl.BlockSpec((1, ts, C), lambda b, s: (b, s, 0)),      # x spatial tile
            pl.BlockSpec(bb_w.shape, lambda b, s: (0, 0)),         # backbone W (resident)
            pl.BlockSpec(bb_b.shape, lambda b, s: (0, 0)),         # backbone bias
            pl.BlockSpec((1, 1, E), lambda b, s: (b, 0, 0)),       # region embedding row
            pl.BlockSpec(w1f.shape, lambda b, s: (0, 0)),          # head weights: resident
            pl.BlockSpec(w1e.shape, lambda b, s: (0, 0)),
            pl.BlockSpec(b1.shape, lambda b, s: (0, 0)),
            pl.BlockSpec(w2.shape, lambda b, s: (0, 0)),
            pl.BlockSpec(b2.shape, lambda b, s: (0, 0)),
            pl.BlockSpec(w3.shape, lambda b, s: (0, 0)),
            pl.BlockSpec(b3.shape, lambda b, s: (0, 0)),
        ],
        out_specs=pl.BlockSpec((1, 1, 2), lambda b, s: (b, 0, 0)),
        scratch_shapes=[pltpu.VMEM((8, F), jnp.float32)],          # pool accumulator
        compiler_params=pltpu.CompilerParams(
            dimension_semantics=("parallel", "arbitrary"),
            vmem_limit_bytes=vmem_limit,
        ),
    )(x_bsc, bb_w, bb_b, region_embed, w1f, w1e, b1, w2, b2, w3, b3)

    return out.reshape(B, 2)


# ----------------------------------------------------------------------------
# Pure-JAX reference (same synthetic backbone) for correctness checks.
# ----------------------------------------------------------------------------
def _reference_forward(x_nhwc, region_id, params):
    B, H, W, C = x_nhwc.shape
    x = x_nhwc.reshape(B, H * W, C)
    feat = jnp.maximum(jnp.einsum("bsc,cf->bsf", x, params["bb_w"]) + params["bb_b"], 0.0)
    pooled = jnp.mean(feat, axis=1)                                       # (B, F)
    emb = jnp.take(params["emb_table"], region_id, axis=0)                # (B, E)
    h1 = jnp.maximum(pooled @ params["w1f"] + emb @ params["w1e"] + params["b1"], 0.0)
    h2 = jnp.maximum(h1 @ params["w2"] + params["b2"], 0.0)
    return h2 @ params["w3"] + params["b3"]


def init_params(key, in_channels, feature_dim, embed_dim, num_regions):
    ks = jax.random.split(key, 7)
    s = 0.05
    return {
        "bb_w": s * jax.random.normal(ks[0], (in_channels, feature_dim), jnp.float32),
        "bb_b": s * jax.random.normal(ks[1], (1, feature_dim), jnp.float32),
        "emb_table": s * jax.random.normal(ks[2], (num_regions, embed_dim), jnp.float32),
        # Linear(F+E, 128) split into F-part and E-part (== concat then matmul)
        "w1f": s * jax.random.normal(ks[3], (feature_dim, 128), jnp.float32),
        "w1e": s * jax.random.normal(ks[4], (embed_dim, 128), jnp.float32),
        "b1": jnp.zeros((1, 128), jnp.float32),
        "w2": s * jax.random.normal(ks[5], (128, 64), jnp.float32),
        "b2": jnp.zeros((1, 64), jnp.float32),
        "w3": s * jax.random.normal(ks[6], (64, 2), jnp.float32),
        "b3": jnp.zeros((1, 2), jnp.float32),
    }


if __name__ == "__main__":
    # Small synthetic shapes: batch=2, channels=4, spatial 16x16 (S=256),
    # feature_dim=128 (lane-dense stand-in for efficientnet_b0's 1280), embed=16.
    B, C, H, W = 2, 4, 16, 16
    FEATURE_DIM, EMBED_DIM, NUM_REGIONS = 128, 16, 4

    key = jax.random.PRNGKey(0)
    kx, kp, kx2 = jax.random.split(key, 3)
    x_nhwc = jax.random.normal(kx, (B, H, W, C), jnp.float32)   # channels-last
    region_id = jnp.array([0, 3], jnp.int32)
    params = init_params(kp, C, FEATURE_DIM, EMBED_DIM, NUM_REGIONS)

    ref = jax.block_until_ready(_reference_forward(x_nhwc, region_id, params))

    # 1) Multi-tile path: spatial_tile=128 -> 2 spatial tiles per batch element,
    #    exercising the pipelined pool accumulation / pl.when init+finalize.
    out = jax.block_until_ready(
        angle_predictor_forward(x_nhwc, region_id, params, spatial_tile=128))
    assert out.shape == (B, 2) and out.dtype == jnp.float32
    assert bool(jnp.all(jnp.isfinite(out)))
    assert bool(jnp.allclose(out, ref, atol=1e-3, rtol=1e-3)), (out, ref)

    # 2) Auto (VMEM-derived) tile: whole spatial extent in one tile.
    out_auto = jax.block_until_ready(angle_predictor_forward(x_nhwc, region_id, params))
    assert bool(jnp.allclose(out_auto, ref, atol=1e-3, rtol=1e-3)), (out_auto, ref)

    # 3) Non-divisible spatial extent (12x12 -> S=144, tile 128): masked tail path.
    x_m = jax.random.normal(kx2, (B, 12, 12, C), jnp.float32)
    out_m = jax.block_until_ready(
        angle_predictor_forward(x_m, region_id, params, spatial_tile=128))
    ref_m = jax.block_until_ready(_reference_forward(x_m, region_id, params))
    assert bool(jnp.allclose(out_m, ref_m, atol=1e-3, rtol=1e-3)), (out_m, ref_m)

    print("KERNEL_OK")
</pallas_src>

<mosaic_0001>
module attributes {stable_mosaic.version = 11 : i64} {
  func.func @_fused_kernel(%arg0: i32, %arg1: i32, %arg2: memref<1x128x4xf32, #tpu.memory_space<vmem>>, %arg3: memref<4x128xf32, #tpu.memory_space<vmem>>, %arg4: memref<1x128xf32, #tpu.memory_space<vmem>>, %arg5: memref<1x1x16xf32, #tpu.memory_space<vmem>>, %arg6: memref<128x128xf32, #tpu.memory_space<vmem>>, %arg7: memref<16x128xf32, #tpu.memory_space<vmem>>, %arg8: memref<1x128xf32, #tpu.memory_space<vmem>>, %arg9: memref<128x64xf32, #tpu.memory_space<vmem>>, %arg10: memref<1x64xf32, #tpu.memory_space<vmem>>, %arg11: memref<64x2xf32, #tpu.memory_space<vmem>>, %arg12: memref<1x2xf32, #tpu.memory_space<vmem>>, %arg13: memref<1x1x2xf32, #tpu.memory_space<vmem>>, %arg14: memref<8x128xf32, #tpu.memory_space<vmem>>) attributes {dimension_semantics = [#tpu.dimension_semantics<parallel>, #tpu.dimension_semantics<arbitrary>], iteration_bounds = array<i64: 2, 2>, scalar_prefetch = 0 : i64, scratch_operands = 1 : i64, tpu.core_type = #tpu.core_type<tc>, window_params = [{transform_indices = @transform_0, window_bounds = array<i64: 1, 128, 4>}, {pipeline_mode = #tpu.pipeline_mode<synchronous>, transform_indices = @transform_1, window_bounds = array<i64: 4, 128>}, {pipeline_mode = #tpu.pipeline_mode<synchronous>, transform_indices = @transform_2, window_bounds = array<i64: 1, 128>}, {transform_indices = @transform_3, window_bounds = array<i64: 1, 1, 16>}, {pipeline_mode = #tpu.pipeline_mode<synchronous>, transform_indices = @transform_4, window_bounds = array<i64: 128, 128>}, {pipeline_mode = #tpu.pipeline_mode<synchronous>, transform_indices = @transform_5, window_bounds = array<i64: 16, 128>}, {pipeline_mode = #tpu.pipeline_mode<synchronous>, transform_indices = @transform_6, window_bounds = array<i64: 1, 128>}, {pipeline_mode = #tpu.pipeline_mode<synchronous>, transform_indices = @transform_7, window_bounds = array<i64: 128, 64>}, {pipeline_mode = #tpu.pipeline_mode<synchronous>, transform_indices = @transform_8, window_bounds = array<i64: 1, 64>}, {pipeline_mode = #tpu.pipeline_mode<synchronous>, transform_indices = @transform_9, window_bounds = array<i64: 64, 2>}, {pipeline_mode = #tpu.pipeline_mode<synchronous>, transform_indices = @transform_10, window_bounds = array<i64: 1, 2>}, {transform_indices = @transform_11, window_bounds = array<i64: 1, 1, 2>}]} {
    %c0_i32 = arith.constant 0 : i32
    %0 = arith.cmpi eq, %arg1, %c0_i32 : i32
    %1 = arith.extui %0 : i1 to i32
    %c0_i32_0 = arith.constant 0 : i32
    %2 = arith.cmpi ne, %1, %c0_i32_0 : i32
    scf.if %2 {
      %cst_14 = arith.constant 0.000000e+00 : f32
      %20 = vector.broadcast %cst_14 : f32 to vector<8x128xf32>
      %c0_15 = arith.constant 0 : index
      %c0_16 = arith.constant 0 : index
      %21 = vector.load %arg14[%c0_15, %c0_16] : memref<8x128xf32, #tpu.memory_space<vmem>>, vector<8x128xf32>
      tpu.vector_store %arg14[%c0_15, %c0_16], %20 {strides = array<i32>} : memref<8x128xf32, #tpu.memory_space<vmem>>, vector<8x128xf32>,
    } else {
    }
    %c0 = arith.constant 0 : index
    %c0_1 = arith.constant 0 : index
    %c0_2 = arith.constant 0 : index
    %3 = vector.load %arg2[%c0, %c0_1, %c0_2] : memref<1x128x4xf32, #tpu.memory_space<vmem>>, vector<1x128x4xf32>
    %4 = vector.shape_cast %3 : vector<1x128x4xf32> to vector<128x4xf32>
    %c0_3 = arith.constant 0 : index
    %c0_4 = arith.constant 0 : index
    %5 = vector.load %arg3[%c0_3, %c0_4] : memref<4x128xf32, #tpu.memory_space<vmem>>, vector<4x128xf32>
    %cst = arith.constant dense<0.000000e+00> : vector<128x128xf32>
    %6 = tpu.matmul %4, %5, %cst {dimension_numbers = #tpu.dot_dimension_numbers<[1], [0], [0], [1], [0, 0, 1, 1], [], []>} : vector<128x4xf32>, vector<4x128xf32>, vector<128x128xf32> -> vector<128x128xf32>
    %c0_5 = arith.constant 0 : index
    %c0_6 = arith.constant 0 : index
    %7 = vector.load %arg4[%c0_5, %c0_6] : memref<1x128xf32, #tpu.memory_space<vmem>>, vector<1x128xf32>
    %8 = vector.broadcast %7 : vector<1x128xf32> to vector<128x128xf32>
    %9 = arith.addf %6, %8 : vector<128x128xf32>
    %cst_7 = arith.constant 0.000000e+00 : f32
    %10 = vector.broadcast %cst_7 : f32 to vector<128x128xf32>
    %11 = arith.maximumf %9, %10 : vector<128x128xf32>
    %c0_8 = arith.constant 0 : index
    %c0_9 = arith.constant 0 : index
    %12 = vector.load %arg14[%c0_8, %c0_9] : memref<8x128xf32, #tpu.memory_space<vmem>>, vector<8x128xf32>
    %13 = vector.shape_cast %11 : vector<128x128xf32> to vector<16x8x128xf32>
    %cst_10 = arith.constant dense<0.000000e+00> : vector<8x128xf32>
    %14 = vector.multi_reduction <add>, %13, %cst_10 [0] : vector<16x8x128xf32> to vector<8x128xf32>
    %15 = arith.addf %12, %14 : vector<8x128xf32>
    %c0_11 = arith.constant 0 : index
    %c0_12 = arith.constant 0 : index
    %16 = vector.load %arg14[%c0_11, %c0_12] : memref<8x128xf32, #tpu.memory_space<vmem>>, vector<8x128xf32>
    tpu.vector_store %arg14[%c0_11, %c0_12], %15 {strides = array<i32>} : memref<8x128xf32, #tpu.memory_space<vmem>>, vector<8x128xf32>,
    %c1_i32 = arith.constant 1 : i32
    %17 = arith.cmpi eq, %arg1, %c1_i32 : i32
    %18 = arith.extui %17 : i1 to i32
    %c0_i32_13 = arith.constant 0 : i32
    %19 = arith.cmpi ne, %18, %c0_i32_13 : i32
    scf.if %19 {
      %c0_14 = arith.constant 0 : index
      %c0_15 = arith.constant 0 : index
      %20 = vector.load %arg14[%c0_14, %c0_15] : memref<8x128xf32, #tpu.memory_space<vmem>>, vector<8x128xf32>
      %cst_16 = arith.constant dense<0.000000e+00> : vector<128xf32>
      %21 = vector.multi_reduction <add>, %20, %cst_16 [0] : vector<8x128xf32> to vector<128xf32>
      %22 = vector.shape_cast %21 : vector<128xf32> to vector<1x128xf32>
      %cst_17 = arith.constant 3.906250e-03 : f32
      %23 = vector.broadcast %cst_17 : f32 to vector<1x128xf32>
      %24 = arith.mulf %22, %23 : vector<1x128xf32>
      %c0_18 = arith.constant 0 : index
      %c0_19 = arith.constant 0 : index
      %c0_20 = arith.constant 0 : index
      %25 = vector.load %arg5[%c0_18, %c0_19, %c0_20] : memref<1x1x16xf32, #tpu.memory_space<vmem>>, vector<1x1x16xf32>
      %26 = vector.shape_cast %25 : vector<1x1x16xf32> to vector<1x16xf32>
      %c0_21 = arith.constant 0 : index
      %c0_22 = arith.constant 0 : index
      %27 = vector.load %arg6[%c0_21, %c0_22] : memref<128x128xf32, #tpu.memory_space<vmem>>, vector<128x128xf32>
      %cst_23 = arith.constant dense<0.000000e+00> : vector<1x128xf32>
      %28 = tpu.matmul %24, %27, %cst_23 {dimension_numbers = #tpu.dot_dimension_numbers<[1], [0], [0], [1], [0, 0, 1, 1], [], []>} : vector<1x128xf32>, vector<128x128xf32>, vector<1x128xf32> -> vector<1x128xf32>
      %c0_24 = arith.constant 0 : index
      %c0_25 = arith.constant 0 : index
      %29 = vector.load %arg7[%c0_24, %c0_25] : memref<16x128xf32, #tpu.memory_space<vmem>>, vector<16x128xf32>
      %cst_26 = arith.constant dense<0.000000e+00> : vector<1x128xf32>
      %30 = tpu.matmul %26, %29, %cst_26 {dimension_numbers = #tpu.dot_dimension_numbers<[1], [0], [0], [1], [0, 0, 1, 1], [], []>} : vector<1x16xf32>, vector<16x128xf32>, vector<1x128xf32> -> vector<1x128xf32>
      %31 = arith.addf %28, %30 : vector<1x128xf32>
      %c0_27 = arith.constant 0 : index
      %c0_28 = arith.constant 0 : index
      %32 = vector.load %arg8[%c0_27, %c0_28] : memref<1x128xf32, #tpu.memory_space<vmem>>, vector<1x128xf32>
      %33 = arith.addf %31, %32 : vector<1x128xf32>
      %cst_29 = arith.constant 0.000000e+00 : f32
      %34 = vector.broadcast %cst_29 : f32 to vector<1x128xf32>
      %35 = arith.maximumf %33, %34 : vector<1x128xf32>
      %c0_30 = arith.constant 0 : index
      %c0_31 = arith.constant 0 : index
      %36 = vector.load %arg9[%c0_30, %c0_31] : memref<128x64xf32, #tpu.memory_space<vmem>>, vector<128x64xf32>
      %cst_32 = arith.constant dense<0.000000e+00> : vector<1x64xf32>
      %37 = tpu.matmul %35, %36, %cst_32 {dimension_numbers = #tpu.dot_dimension_numbers<[1], [0], [0], [1], [0, 0, 1, 1], [], []>} : vector<1x128xf32>, vector<128x64xf32>, vector<1x64xf32> -> vector<1x64xf32>
      %c0_33 = arith.constant 0 : index
      %c0_34 = arith.constant 0 : index
      %38 = vector.load %arg10[%c0_33, %c0_34] : memref<1x64xf32, #tpu.memory_space<vmem>>, vector<1x64xf32>
      %39 = arith.addf %37, %38 : vector<1x64xf32>
      %cst_35 = arith.constant 0.000000e+00 : f32
      %40 = vector.broadcast %cst_35 : f32 to vector<1x64xf32>
      %41 = arith.maximumf %39, %40 : vector<1x64xf32>
      %c0_36 = arith.constant 0 : index
      %c0_37 = arith.constant 0 : index
      %42 = vector.load %arg11[%c0_36, %c0_37] : memref<64x2xf32, #tpu.memory_space<vmem>>, vector<64x2xf32>
      %cst_38 = arith.constant dense<0.000000e+00> : vector<1x2xf32>
      %43 = tpu.matmul %41, %42, %cst_38 {dimension_numbers = #tpu.dot_dimension_numbers<[1], [0], [0], [1], [0, 0, 1, 1], [], []>} : vector<1x64xf32>, vector<64x2xf32>, vector<1x2xf32> -> vector<1x2xf32>
      %c0_39 = arith.constant 0 : index
      %c0_40 = arith.constant 0 : index
      %44 = vector.load %arg12[%c0_39, %c0_40] : memref<1x2xf32, #tpu.memory_space<vmem>>, vector<1x2xf32>
      %45 = arith.addf %43, %44 : vector<1x2xf32>
      %c0_41 = arith.constant 0 : index
      %c0_42 = arith.constant 0 : index
      %c0_43 = arith.constant 0 : index
      %46 = vector.load %arg13[%c0_41, %c0_42, %c0_43] : memref<1x1x2xf32, #tpu.memory_space<vmem>>, vector<1x1x2xf32>
      %47 = vector.shape_cast %46 : vector<1x1x2xf32> to vector<1x2xf32>
      %48 = vector.shape_cast %45 : vector<1x2xf32> to vector<1x1x2xf32>
      tpu.vector_store %arg13[%c0_41, %c0_42, %c0_43], %48 {strides = array<i32>} : memref<1x1x2xf32, #tpu.memory_space<vmem>>, vector<1x1x2xf32>,
    } else {
    }
    return
  }
  func.func @transform_0(%arg0: i32, %arg1: i32) -> (i32, i32, i32) {
    %c0_i32 = arith.constant 0 : i32
    %c0_i32_0 = arith.constant 0 : i32
    return %arg0, %arg1, %c0_i32 : i32, i32, i32
  }
  func.func @transform_1(%arg0: i32, %arg1: i32) -> (i32, i32) {
    %c0_i32 = arith.constant 0 : i32
    %c0_i32_0 = arith.constant 0 : i32
    %c0_i32_1 = arith.constant 0 : i32
    return %c0_i32, %c0_i32_0 : i32, i32
  }
  func.func @transform_2(%arg0: i32, %arg1: i32) -> (i32, i32) {
    %c0_i32 = arith.constant 0 : i32
    %c0_i32_0 = arith.constant 0 : i32
    %c0_i32_1 = arith.constant 0 : i32
    return %c0_i32, %c0_i32_0 : i32, i32
  }
  func.func @transform_3(%arg0: i32, %arg1: i32) -> (i32, i32, i32) {
    %c0_i32 = arith.constant 0 : i32
    %c0_i32_0 = arith.constant 0 : i32
    %c0_i32_1 = arith.constant 0 : i32
    return %arg0, %c0_i32, %c0_i32_0 : i32, i32, i32
  }
  func.func @transform_4(%arg0: i32, %arg1: i32) -> (i32, i32) {
    %c0_i32 = arith.constant 0 : i32
    %c0_i32_0 = arith.constant 0 : i32
    %c0_i32_1 = arith.constant 0 : i32
    return %c0_i32, %c0_i32_0 : i32, i32
  }
  func.func @transform_5(%arg0: i32, %arg1: i32) -> (i32, i32) {
    %c0_i32 = arith.constant 0 : i32
    %c0_i32_0 = arith.constant 0 : i32
    %c0_i32_1 = arith.constant 0 : i32
    return %c0_i32, %c0_i32_0 : i32, i32
  }
  func.func @transform_6(%arg0: i32, %arg1: i32) -> (i32, i32) {
    %c0_i32 = arith.constant 0 : i32
    %c0_i32_0 = arith.constant 0 : i32
    %c0_i32_1 = arith.constant 0 : i32
    return %c0_i32, %c0_i32_0 : i32, i32
  }
  func.func @transform_7(%arg0: i32, %arg1: i32) -> (i32, i32) {
    %c0_i32 = arith.constant 0 : i32
    %c0_i32_0 = arith.constant 0 : i32
    %c0_i32_1 = arith.constant 0 : i32
    return %c0_i32, %c0_i32_0 : i32, i32
  }
  func.func @transform_8(%arg0: i32, %arg1: i32) -> (i32, i32) {
    %c0_i32 = arith.constant 0 : i32
    %c0_i32_0 = arith.constant 0 : i32
    %c0_i32_1 = arith.constant 0 : i32
    return %c0_i32, %c0_i32_0 : i32, i32
  }
  func.func @transform_9(%arg0: i32, %arg1: i32) -> (i32, i32) {
    %c0_i32 = arith.constant 0 : i32
    %c0_i32_0 = arith.constant 0 : i32
    %c0_i32_1 = arith.constant 0 : i32
    return %c0_i32, %c0_i32_0 : i32, i32
  }
  func.func @transform_10(%arg0: i32, %arg1: i32) -> (i32, i32) {
    %c0_i32 = arith.constant 0 : i32
    %c0_i32_0 = arith.constant 0 : i32
    %c0_i32_1 = arith.constant 0 : i32
    return %c0_i32, %c0_i32_0 : i32, i32
  }
  func.func @transform_11(%arg0: i32, %arg1: i32) -> (i32, i32, i32) {
    %c0_i32 = arith.constant 0 : i32
    %c0_i32_0 = arith.constant 0 : i32
    %c0_i32_1 = arith.constant 0 : i32
    return %arg0, %c0_i32, %c0_i32_0 : i32, i32, i32
  }
}

</mosaic_0001>

<llo_original>
// kernel: tpu_custom_call.1
$region0: #{tpu_custom_call.1}
  #allocation0 [shape = 'u32[]', space=smem, size = 0x4, offset = 0x4, fixed_abs, tag = 'smem constant byte address 0x4 - core index']
  #allocation1 [shape = 'u32[144,128]{1,0:T(1,128)}', space=vmem, size = 0x12000, scoped, tag = 'internal scratch']
  #allocation2 [shape = 'f32[8,128]{1,0:T(8,128)}', space=vmem, size = 0x1000, scoped, tag = 'scratch operand']
  %s0 = inlined_call_operand.vmem [shape: f32[2,256,4], index: 0, kind: input, shape index: {}]
  %s1 = inlined_call_operand.vmem [shape: f32[4,128], index: 1, kind: input, shape index: {}]
  %s2 = inlined_call_operand.vmem [shape: f32[1,128], index: 2, kind: input, shape index: {}]
  %s3 = inlined_call_operand.vmem [shape: f32[2,1,16], index: 3, kind: input, shape index: {}]
  %s4 = inlined_call_operand.vmem [shape: f32[128,128], index: 4, kind: input, shape index: {}]
  %s5 = inlined_call_operand.vmem [shape: f32[16,128], index: 5, kind: input, shape index: {}]
  %s6 = inlined_call_operand.vmem [shape: f32[1,128], index: 6, kind: input, shape index: {}]
  %s7 = inlined_call_operand.vmem [shape: f32[128,64], index: 7, kind: input, shape index: {}]
  %s8 = inlined_call_operand.vmem [shape: f32[1,64], index: 8, kind: input, shape index: {}]
  %s9 = inlined_call_operand.vmem [shape: f32[64,2], index: 9, kind: input, shape index: {}]
  %s10 = inlined_call_operand.vmem [shape: f32[1,2], index: 10, kind: input, shape index: {}]
  %s11 = inlined_call_operand.hbm [shape: f32[2,1,2], index: 11, kind: output, shape index: {}]
  %s12 = sld [smem:[#allocation0]]
  $region85: #{tpu_custom_call.1} parent=0
    _
  %s14 = ssub.s32 1, %s12
  %s15 = scalar_select 0, %s14, %s12
  $region1: #{tpu_custom_call.1} parent=0
    #allocation3 [shape = 'u8[1024]{0}', space=vmem, size = 0x400, scoped, tag = 'output window, operand 0']
    #allocation4 [shape = 's32[2]{0}', space=sflag, size = 0x8, scoped, tag = 'scoped memory for tpu_custom_call.1']
    %16 = vsyncpa [#allocation4], 0
    %s17 = scalar_lea.sflag [#allocation4], 1
    %18 = vsyncpa %s17, 0
    loop: start=0, step=1, limit=6
    $region2: #{tpu_custom_call.1} parent=1 // loop_pre_header
      _
    $region3: #{tpu_custom_call.1} parent=1 // loop_header
      %s20 = sphi 0, %s24
      %p21 = scmp.ge.s32.totalorder %s20, 6
      %s27 = sphi 0, %s39
      %s28 = sphi 0, %s35
      %s29 = sphi 0, %s27
      %s30 = sphi 0, %s28
      %s31 = sphi 0, %s29
      %s32 = sphi 0, %s30
      %s44 = sphi 0, %s46
      %s47 = sphi 0, %s44
      %s48 = sphi 0, %s47
      %s64 = sphi 0, %s48
      %s68 = sphi 0, %s68
      %s70 = sphi 0, %s68
      %s71 = sphi 0, %s70
      %s85 = sphi 0, %s71
      %s89 = sphi 0, %s89
      %s91 = sphi 0, %s89
      %s92 = sphi 0, %s91
      %s106 = sphi 0, %s92
      %s112 = sphi 0, %s114
      %s115 = sphi 0, %s112
      %s116 = sphi 0, %s115
      %s132 = sphi 0, %s116
      %s136 = sphi 0, %s136
      %s138 = sphi 0, %s136
      %s139 = sphi 0, %s138
      %s153 = sphi 0, %s139
      %s157 = sphi 0, %s157
      %s159 = sphi 0, %s157
      %s160 = sphi 0, %s159
      %s174 = sphi 0, %s160
      %s178 = sphi 0, %s178
      %s180 = sphi 0, %s178
      %s181 = sphi 0, %s180
      %s195 = sphi 0, %s181
      %s199 = sphi 0, %s199
      %s201 = sphi 0, %s199
      %s202 = sphi 0, %s201
      %s216 = sphi 0, %s202
      %s220 = sphi 0, %s220
      %s222 = sphi 0, %s220
      %s223 = sphi 0, %s222
      %s237 = sphi 0, %s223
      %s241 = sphi 0, %s241
      %s243 = sphi 0, %s241
      %s244 = sphi 0, %s243
      %s258 = sphi 0, %s244
      %s262 = sphi 0, %s262
      %s264 = sphi 0, %s262
      %s265 = sphi 0, %s264
      %s279 = sphi 0, %s265
      %s285 = sphi 0, %s287
      %s288 = sphi 0, %s285
      %s289 = sphi 0, %s288
      %s305 = sphi 0, %s289
    $region4: #{tpu_custom_call.1} parent=1 // loop_header_branch
      %23 = sbr.rel (%p21) target = $region8
    $region5: #{tpu_custom_call.1} parent=1 // loop_body
      %s25 = ssub.s32 %s20, 1
      %s26 = ssub.s32 %s20, 2
      %s33 = sadd.s32 1, %s28
      %p34 = scmp.ge.s32.totalorder %s33, 2
      %s35 = scalar_select %p34, 0, %s33
      %s36 = sadd.s32 1, %s27
      %s37 = scalar_select %p34, %s36, %s27
      %p38 = scmp.ge.s32.totalorder %s37, 2
      %s39 = scalar_select %p38, 0, %s37
      %s40 = ssub.s32 %s27, %s39
      %s41 = ssub.s32 %s28, %s35
      %s42 = sor.u32 %s40, %s41
      %p43 = scmp.eq.s32.totalorder %s42, 0
      %s45 = sadd.s32 %s44, 1
      %s46 = scalar_select %p43, %s44, %s45
      %p49 = pneg %p43
      %p50 = scmp.eq.s32.totalorder %s20, 3
      %p51 = por %p49, %p50
      %p52 = scmp.ne.s32.totalorder %s44, %s47
      %p53 = scmp.eq.s32.totalorder %s20, 0
      %p54 = por %p52, %p53
      %p55 = scmp.ne.s32.totalorder %s44, %s47
      %p56 = scmp.eq.s32.totalorder %s25, 3
      %p57 = por %p55, %p56
      %p58 = scmp.ne.s32.totalorder %s47, %s48
      %p59 = scmp.eq.s32.totalorder %s25, 0
      %p60 = por %p58, %p59
      %p61 = scmp.ne.s32.totalorder %s47, %s48
      %p62 = scmp.eq.s32.totalorder %s26, 3
      %p63 = por %p61, %p62
      %p65 = scmp.ne.s32.totalorder %s48, %s64
      %p66 = scmp.eq.s32.totalorder %s26, 0
      %p67 = por %p65, %p66
      %s69 = sadd.s32 %s68, 1
      %p72 = scmp.eq.s32.totalorder %s20, 3
      %p73 = scmp.ne.s32.totalorder %s68, %s70
      %p74 = scmp.eq.s32.totalorder %s20, 0
      %p75 = por %p73, %p74
      %p76 = scmp.ne.s32.totalorder %s68, %s70
      %p77 = scmp.eq.s32.totalorder %s25, 3
      %p78 = por %p76, %p77
      %p79 = scmp.ne.s32.totalorder %s70, %s71
      %p80 = scmp.eq.s32.totalorder %s25, 0
      %p81 = por %p79, %p80
      %p82 = scmp.ne.s32.totalorder %s70, %s71
      %p83 = scmp.eq.s32.totalorder %s26, 3
      %p84 = por %p82, %p83
      %p86 = scmp.ne.s32.totalorder %s71, %s85
      %p87 = scmp.eq.s32.totalorder %s26, 0
      %p88 = por %p86, %p87
      %s90 = sadd.s32 %s89, 1
      %p93 = scmp.eq.s32.totalorder %s20, 3
      %p94 = scmp.ne.s32.totalorder %s89, %s91
      %p95 = scmp.eq.s32.totalorder %s20, 0
      %p96 = por %p94, %p95
      %p97 = scmp.ne.s32.totalorder %s89, %s91
      %p98 = scmp.eq.s32.totalorder %s25, 3
      %p99 = por %p97, %p98
      %p100 = scmp.ne.s32.totalorder %s91, %s92
      %p101 = scmp.eq.s32.totalorder %s25, 0
      %p102 = por %p100, %p101
      %p103 = scmp.ne.s32.totalorder %s91, %s92
      %p104 = scmp.eq.s32.totalorder %s26, 3
      %p105 = por %p103, %p104
      %p107 = scmp.ne.s32.totalorder %s92, %s106
      %p108 = scmp.eq.s32.totalorder %s26, 0
      %p109 = por %p107, %p108
      %s110 = ssub.s32 %s27, %s39
      %p111 = scmp.eq.s32.totalorder %s110, 0
      %s113 = sadd.s32 %s112, 1
      %s114 = scalar_select %p111, %s112, %s113
      %p117 = pneg %p111
      %p118 = scmp.eq.s32.totalorder %s20, 3
      %p119 = por %p117, %p118
      %p120 = scmp.ne.s32.totalorder %s112, %s115
      %p121 = scmp.eq.s32.totalorder %s20, 0
      %p122 = por %p120, %p121
      %p123 = scmp.ne.s32.totalorder %s112, %s115
      %p124 = scmp.eq.s32.totalorder %s25, 3
      %p125 = por %p123, %p124
      %p126 = scmp.ne.s32.totalorder %s115, %s116
      %p127 = scmp.eq.s32.totalorder %s25, 0
      %p128 = por %p126, %p127
      %p129 = scmp.ne.s32.totalorder %s115, %s116
      %p130 = scmp.eq.s32.totalorder %s26, 3
      %p131 = por %p129, %p130
      %p133 = scmp.ne.s32.totalorder %s116, %s132
      %p134 = scmp.eq.s32.totalorder %s26, 0
      %p135 = por %p133, %p134
      %s137 = sadd.s32 %s136, 1
      %p140 = scmp.eq.s32.totalorder %s20, 3
      %p141 = scmp.ne.s32.totalorder %s136, %s138
      %p142 = scmp.eq.s32.totalorder %s20, 0
      %p143 = por %p141, %p142
      %p144 = scmp.ne.s32.totalorder %s136, %s138
      %p145 = scmp.eq.s32.totalorder %s25, 3
      %p146 = por %p144, %p145
      %p147 = scmp.ne.s32.totalorder %s138, %s139
      %p148 = scmp.eq.s32.totalorder %s25, 0
      %p149 = por %p147, %p148
      %p150 = scmp.ne.s32.totalorder %s138, %s139
      %p151 = scmp.eq.s32.totalorder %s26, 3
      %p152 = por %p150, %p151
      %p154 = scmp.ne.s32.totalorder %s139, %s153
      %p155 = scmp.eq.s32.totalorder %s26, 0
      %p156 = por %p154, %p155
      %s158 = sadd.s32 %s157, 1
      %p161 = scmp.eq.s32.totalorder %s20, 3
      %p162 = scmp.ne.s32.totalorder %s157, %s159
      %p163 = scmp.eq.s32.totalorder %s20, 0
      %p164 = por %p162, %p163
      %p165 = scmp.ne.s32.totalorder %s157, %s159
      %p166 = scmp.eq.s32.totalorder %s25, 3
      %p167 = por %p165, %p166
      %p168 = scmp.ne.s32.totalorder %s159, %s160
      %p169 = scmp.eq.s32.totalorder %s25, 0
      %p170 = por %p168, %p169
      %p171 = scmp.ne.s32.totalorder %s159, %s160
      %p172 = scmp.eq.s32.totalorder %s26, 3
      %p173 = por %p171, %p172
      %p175 = scmp.ne.s32.totalorder %s160, %s174
      %p176 = scmp.eq.s32.totalorder %s26, 0
      %p177 = por %p175, %p176
      %s179 = sadd.s32 %s178, 1
      %p182 = scmp.eq.s32.totalorder %s20, 3
      %p183 = scmp.ne.s32.totalorder %s178, %s180
      %p184 = scmp.eq.s32.totalorder %s20, 0
      %p185 = por %p183, %p184
      %p186 = scmp.ne.s32.totalorder %s178, %s180
      %p187 = scmp.eq.s32.totalorder %s25, 3
      %p188 = por %p186, %p187
      %p189 = scmp.ne.s32.totalorder %s180, %s181
      %p190 = scmp.eq.s32.totalorder %s25, 0
      %p191 = por %p189, %p190
      %p192 = scmp.ne.s32.totalorder %s180, %s181
      %p193 = scmp.eq.s32.totalorder %s26, 3
      %p194 = por %p192, %p193
      %p196 = scmp.ne.s32.totalorder %s181, %s195
      %p197 = scmp.eq.s32.totalorder %s26, 0
      %p198 = por %p196, %p197
      %s200 = sadd.s32 %s199, 1
      %p203 = scmp.eq.s32.totalorder %s20, 3
      %p204 = scmp.ne.s32.totalorder %s199, %s201
      %p205 = scmp.eq.s32.totalorder %s20, 0
      %p206 = por %p204, %p205
      %p207 = scmp.ne.s32.totalorder %s199, %s201
      %p208 = scmp.eq.s32.totalorder %s25, 3
      %p209 = por %p207, %p208
      %p210 = scmp.ne.s32.totalorder %s201, %s202
      %p211 = scmp.eq.s32.totalorder %s25, 0
      %p212 = por %p210, %p211
      %p213 = scmp.ne.s32.totalorder %s201, %s202
      %p214 = scmp.eq.s32.totalorder %s26, 3
      %p215 = por %p213, %p214
      %p217 = scmp.ne.s32.totalorder %s202, %s216
      %p218 = scmp.eq.s32.totalorder %s26, 0
      %p219 = por %p217, %p218
      %s221 = sadd.s32 %s220, 1
      %p224 = scmp.eq.s32.totalorder %s20, 3
      %p225 = scmp.ne.s32.totalorder %s220, %s222
      %p226 = scmp.eq.s32.totalorder %s20, 0
      %p227 = por %p225, %p226
      %p228 = scmp.ne.s32.totalorder %s220, %s222
      %p229 = scmp.eq.s32.totalorder %s25, 3
      %p230 = por %p228, %p229
      %p231 = scmp.ne.s32.totalorder %s222, %s223
      %p232 = scmp.eq.s32.totalorder %s25, 0
      %p233 = por %p231, %p232
      %p234 = scmp.ne.s32.totalorder %s222, %s223
      %p235 = scmp.eq.s32.totalorder %s26, 3
      %p236 = por %p234, %p235
      %p238 = scmp.ne.s32.totalorder %s223, %s237
      %p239 = scmp.eq.s32.totalorder %s26, 0
      %p240 = por %p238, %p239
      %s242 = sadd.s32 %s241, 1
      %p245 = scmp.eq.s32.totalorder %s20, 3
      %p246 = scmp.ne.s32.totalorder %s241, %s243
      %p247 = scmp.eq.s32.totalorder %s20, 0
      %p248 = por %p246, %p247
      %p249 = scmp.ne.s32.totalorder %s241, %s243
      %p250 = scmp.eq.s32.totalorder %s25, 3
      %p251 = por %p249, %p250
      %p252 = scmp.ne.s32.totalorder %s243, %s244
      %p253 = scmp.eq.s32.totalorder %s25, 0
      %p254 = por %p252, %p253
      %p255 = scmp.ne.s32.totalorder %s243, %s244
      %p256 = scmp.eq.s32.totalorder %s26, 3
      %p257 = por %p255, %p256
      %p259 = scmp.ne.s32.totalorder %s244, %s258
      %p260 = scmp.eq.s32.totalorder %s26, 0
      %p261 = por %p259, %p260
      %s263 = sadd.s32 %s262, 1
      %p266 = scmp.eq.s32.totalorder %s20, 3
      %p267 = scmp.ne.s32.totalorder %s262, %s264
      %p268 = scmp.eq.s32.totalorder %s20, 0
      %p269 = por %p267, %p268
      %p270 = scmp.ne.s32.totalorder %s262, %s264
      %p271 = scmp.eq.s32.totalorder %s25, 3
      %p272 = por %p270, %p271
      %p273 = scmp.ne.s32.totalorder %s264, %s265
      %p274 = scmp.eq.s32.totalorder %s25, 0
      %p275 = por %p273, %p274
      %p276 = scmp.ne.s32.totalorder %s264, %s265
      %p277 = scmp.eq.s32.totalorder %s26, 3
      %p278 = por %p276, %p277
      %p280 = scmp.ne.s32.totalorder %s265, %s279
      %p281 = scmp.eq.s32.totalorder %s26, 0
      %p282 = por %p280, %p281
      %s283 = ssub.s32 %s27, %s39
      %p284 = scmp.eq.s32.totalorder %s283, 0
      %s286 = sadd.s32 %s285, 1
      %s287 = scalar_select %p284, %s285, %s286
      %p290 = pneg %p284
      %p291 = scmp.eq.s32.totalorder %s20, 3
      %p292 = por %p290, %p291
      %p293 = scmp.ne.s32.totalorder %s285, %s288
      %p294 = scmp.eq.s32.totalorder %s20, 0
      %p295 = por %p293, %p294
      %p296 = scmp.ne.s32.totalorder %s285, %s288
      %p297 = scmp.eq.s32.totalorder %s25, 3
      %p298 = por %p296, %p297
      %p299 = scmp.ne.s32.totalorder %s288, %s289
      %p300 = scmp.eq.s32.totalorder %s25, 0
      %p301 = por %p299, %p300
      %p302 = scmp.ne.s32.totalorder %s288, %s289
      %p303 = scmp.eq.s32.totalorder %s26, 3
      %p304 = por %p302, %p303
      %p306 = scmp.ne.s32.totalorder %s289, %s305
      %p307 = scmp.eq.s32.totalorder %s26, 0
      %p308 = por %p306, %p307
      %p309 = scmp.le.s32.totalorder 1, %s20
      %p310 = scmp.lt.s32.totalorder %s20, 5
      %p311 = pnand %p309, %p310
      %p312 = pneg %p311
      // Predicated region
      $region9: #{tpu_custom_call.1} parent=5 // pred_check
        _
      $region10: #{tpu_custom_call.1} parent=5 // pred_check_branch
        %314 = sbr.rel (%p311) target = $region12
      $region11: #{tpu_custom_call.1} parent=5 // pred_region
        %s315 = ssub.s32 %s20, 1
        // Predicated region
        $region13: #{tpu_custom_call.1} parent=11 // pred_check
          %p316 = pneg %p81
        $region14: #{tpu_custom_call.1} parent=11 // pred_check_branch
          %318 = sbr.rel (%p316) target = $region16
        $region15: #{tpu_custom_call.1} parent=11 // pred_region
          _
        $region16: #{tpu_custom_call.1} parent=11 // pred_fallthru
          _
        // Predicated region
        $region17: #{tpu_custom_call.1} parent=11 // pred_check
          %p319 = pneg %p102
        $region18: #{tpu_custom_call.1} parent=11 // pred_check_branch
          %321 = sbr.rel (%p319) target = $region20
        $region19: #{tpu_custom_call.1} parent=11 // pred_region
          _
        $region20: #{tpu_custom_call.1} parent=11 // pred_fallthru
          _
        // Predicated region
        $region21: #{tpu_custom_call.1} parent=11 // pred_check
          %p322 = pneg %p149
        $region22: #{tpu_custom_call.1} parent=11 // pred_check_branch
          %324 = sbr.rel (%p322) target = $region24
        $region23: #{tpu_custom_call.1} parent=11 // pred_region
          _
        $region24: #{tpu_custom_call.1} parent=11 // pred_fallthru
          _
        // Predicated region
        $region25: #{tpu_custom_call.1} parent=11 // pred_check
          %p325 = pneg %p170
        $region26: #{tpu_custom_call.1} parent=11 // pred_check_branch
          %327 = sbr.rel (%p325) target = $region28
        $region27: #{tpu_custom_call.1} parent=11 // pred_region
          _
        $region28: #{tpu_custom_call.1} parent=11 // pred_fallthru
          _
        // Predicated region
        $region29: #{tpu_custom_call.1} parent=11 // pred_check
          %p328 = pneg %p191
        $region30: #{tpu_custom_call.1} parent=11 // pred_check_branch
          %330 = sbr.rel (%p328) target = $region32
        $region31: #{tpu_custom_call.1} parent=11 // pred_region
          _
        $region32: #{tpu_custom_call.1} parent=11 // pred_fallthru
          _
        // Predicated region
        $region33: #{tpu_custom_call.1} parent=11 // pred_check
          %p331 = pneg %p212
        $region34: #{tpu_custom_call.1} parent=11 // pred_check_branch
          %333 = sbr.rel (%p331) target = $region36
        $region35: #{tpu_custom_call.1} parent=11 // pred_region
          _
        $region36: #{tpu_custom_call.1} parent=11 // pred_fallthru
          _
        // Predicated region
        $region37: #{tpu_custom_call.1} parent=11 // pred_check
          %p334 = pneg %p233
        $region38: #{tpu_custom_call.1} parent=11 // pred_check_branch
          %336 = sbr.rel (%p334) target = $region40
        $region39: #{tpu_custom_call.1} parent=11 // pred_region
          _
        $region40: #{tpu_custom_call.1} parent=11 // pred_fallthru
          _
        // Predicated region
        $region41: #{tpu_custom_call.1} parent=11 // pred_check
          %p337 = pneg %p254
        $region42: #{tpu_custom_call.1} parent=11 // pred_check_branch
          %339 = sbr.rel (%p337) target = $region44
        $region43: #{tpu_custom_call.1} parent=11 // pred_region
          _
        $region44: #{tpu_custom_call.1} parent=11 // pred_fallthru
          _
        // Predicated region
        $region45: #{tpu_custom_call.1} parent=11 // pred_check
          %p340 = pneg %p275
        $region46: #{tpu_custom_call.1} parent=11 // pred_check_branch
          %342 = sbr.rel (%p340) target = $region48
        $region47: #{tpu_custom_call.1} parent=11 // pred_region
          _
        $region48: #{tpu_custom_call.1} parent=11 // pred_fallthru
          _
      $region12: #{tpu_custom_call.1} parent=5 // pred_fallthru
        _
      %p343 = scmp.lt.s32.totalorder %s20, 4
      // Predicated region
      $region49: #{tpu_custom_call.1} parent=5 // pred_check
        %p344 = pneg %p343
      $region50: #{tpu_custom_call.1} parent=5 // pred_check_branch
        %346 = sbr.rel (%p344) target = $region52
      $region51: #{tpu_custom_call.1} parent=5 // pred_region
        // Predicated region
        $region53: #{tpu_custom_call.1} parent=51 // pred_check
          %p347 = pneg %p54
        $region54: #{tpu_custom_call.1} parent=51 // pred_check_branch
          %349 = sbr.rel (%p347) target = $region56
        $region55: #{tpu_custom_call.1} parent=51 // pred_region
          %s350 = smul.u32 16, %s28
          %p351 = scmp.lt.s32.totalorder %s27, 1
          %s352 = scalar_select %p351, %s27, 1
          %p353 = scmp.lt.s32.totalorder %s350, 31
          %s354 = scalar_select %p353, %s350, 31
          %s355 = smul.addr %s352, 32
          %s356 = sadd.s32 %s354, %s355
          %s357 = smul.addr %s356, 8
          %s358 = scalar_lea.vmem %s0, %s357
          %s359 = smul.u32 16, %s28
        $region56: #{tpu_custom_call.1} parent=51 // pred_fallthru
          _
        // Predicated region
        $region57: #{tpu_custom_call.1} parent=51 // pred_check
          %p360 = pneg %p122
        $region58: #{tpu_custom_call.1} parent=51 // pred_check_branch
          %362 = sbr.rel (%p360) target = $region60
        $region59: #{tpu_custom_call.1} parent=51 // pred_region
          %p363 = scmp.lt.s32.totalorder %s27, 1
          %s364 = scalar_select %p363, %s27, 1
          %s365 = scalar_lea.vmem %s3, %s364
        $region60: #{tpu_custom_call.1} parent=51 // pred_fallthru
          _
      $region52: #{tpu_custom_call.1} parent=5 // pred_fallthru
        _
      %p366 = scmp.le.s32.totalorder 1, %s20
      %p367 = scmp.lt.s32.totalorder %s20, 5
      %p368 = pnand %p366, %p367
      %p369 = pneg %p368
      // Predicated region
      $region61: #{tpu_custom_call.1} parent=5 // pred_check
        _
      $region62: #{tpu_custom_call.1} parent=5 // pred_check_branch
        %371 = sbr.rel (%p368) target = $region64
      $region63: #{tpu_custom_call.1} parent=5 // pred_region
        %s372 = ssub.s32 %s20, 1
        %s373 = smul.u32 16, %s30
        %p374 = scmp.lt.s32.totalorder %s29, 1
        %s375 = scalar_select %p374, %s29, 1
        %p376 = scmp.lt.s32.totalorder %s373, 31
        %s377 = scalar_select %p376, %s373, 31
        %s378 = smul.addr %s375, 32
        %s379 = sadd.s32 %s377, %s378
        %s380 = smul.addr %s379, 8
        %s381 = scalar_lea.vmem %s0, %s380
        %p382 = pneg %p60
        %p383 = pneg %p57
        %p384 = pneg %p81
        %p385 = pneg %p78
        %p386 = pneg %p102
        %p387 = pneg %p99
        %p388 = scmp.lt.s32.totalorder %s29, 1
        %s389 = scalar_select %p388, %s29, 1
        %s390 = scalar_lea.vmem %s3, %s389
        %p391 = pneg %p128
        %p392 = pneg %p125
        %p393 = pneg %p149
        %p394 = pneg %p146
        %p395 = pneg %p170
        %p396 = pneg %p167
        %p397 = pneg %p191
        %p398 = pneg %p188
        %p399 = pneg %p212
        %p400 = pneg %p209
        %p401 = pneg %p233
        %p402 = pneg %p230
        %p403 = pneg %p254
        %p404 = pneg %p251
        %p405 = pneg %p275
        %p406 = pneg %p272
        %p407 = pneg %p301
        %p408 = pneg %p298
        %s409 = sand.u32 %s288, 1
        %s410 = scalar_lea.sflag [#allocation4], %s409
        %s411 = sand.u32 %s288, 1
        %s412 = scalar_lea.vmem [#allocation3], %s411
        %s413 = smul.u32 16, %s30
        %p414 = scmp.lt.s32.totalorder %s29, 1
        %s415 = scalar_select %p414, %s29, 1
        %p416 = scmp.lt.s32.totalorder %s413, 31
        %s417 = scalar_select %p416, %s413, 31
        %s418 = smul.addr %s415, 32
        %s419 = sadd.s32 %s417, %s418
        %s420 = smul.addr %s419, 8
        %s421 = scalar_lea.vmem %s0, %s420
        %s422 = smul.u32 16, %s30
        %p423 = scmp.lt.s32.totalorder %s29, 1
        %s424 = scalar_select %p423, %s29, 1
        %s425 = scalar_lea.vmem %s3, %s424
        %p426 = scmp.eq.s32.totalorder %s30, 0
        // Predicated region
        $region65: #{tpu_custom_call.1} parent=63 // pred_check
          %p427 = pneg %p426
        $region66: #{tpu_custom_call.1} parent=63 // pred_check_branch
          %429 = sbr.rel (%p427) target = $region68
        $region67: #{tpu_custom_call.1} parent=63 // pred_region
          %430 = vst [vmem:[#allocation2] sm:$0xff] 0.0
        $region68: #{tpu_custom_call.1} parent=63 // pred_fallthru
          _
        %v431 = vld [vmem:[%s421] sm:$0xff]
        %v432 = vld [vmem:[%s421 + $0x8] sm:$0xff]
        %v433 = vld [vmem:[%s421 + $0x10] sm:$0xff]
        %v434 = vld [vmem:[%s421 + $0x18] sm:$0xff]
        %v435 = vld [vmem:[%s421 + $0x20] sm:$0xff]
        %v436 = vld [vmem:[%s421 + $0x28] sm:$0xff]
        %v437 = vld [vmem:[%s421 + $0x30] sm:$0xff]
        %v438 = vld [vmem:[%s421 + $0x38] sm:$0xff]
        %v439 = vld [vmem:[%s421 + $0x40] sm:$0xff]
        %v440 = vld [vmem:[%s421 + $0x48] sm:$0xff]
        %v441 = vld [vmem:[%s421 + $0x50] sm:$0xff]
        %v442 = vld [vmem:[%s421 + $0x58] sm:$0xff]
        %v443 = vld [vmem:[%s421 + $0x60] sm:$0xff]
        %v444 = vld [vmem:[%s421 + $0x68] sm:$0xff]
        %v445 = vld [vmem:[%s421 + $0x70] sm:$0xff]
        %v446 = vld [vmem:[%s421 + $0x78] sm:$0xff]
        %v447 = vld [vmem:[%s1] sm:$0xf]
        %v448 = vld [vmem:[%s2] sm:$0x1]
        %v450 = vlaneseq
        %v451 = vshrl.u32 %v450, 7
        %v452 = vsub.s32 0, %v451
        %v453 = vrot.slane %v448, %v452
        %vm455 = vcmask 31744
        %v457 = vsel %vm455, %v431, 0
        %v460 = vsel %vm455, %v432, 0
        %v463 = vsel %vm455, %v433, 0
        %v466 = vsel %vm455, %v434, 0
        %v469 = vsel %vm455, %v435, 0
        %v472 = vsel %vm455, %v436, 0
        %v475 = vsel %vm455, %v437, 0
        %v478 = vsel %vm455, %v438, 0
        %v481 = vsel %vm455, %v439, 0
        %v484 = vsel %vm455, %v440, 0
        %v487 = vsel %vm455, %v441, 0
        %v490 = vsel %vm455, %v442, 0
        %v493 = vsel %vm455, %v443, 0
        %v496 = vsel %vm455, %v444, 0
        %v499 = vsel %vm455, %v445, 0
        %v502 = vsel %vm455, %v446, 0
        %vm504 = vcmask 1043456
        %v506 = vsel %vm504, %v447, 0
        %508 = vmatprep.subr.mxu0 0.0
        %509 = vmatpush1.msra.mxu0 %v506
        %510 = vmatprep.subr.mxu0 0.0
        %511 = vmatpush1.msra.mxu0 0.0
        %512 = vmatprep.subr.mxu0 0.0
        %513 = vmatpush1.msra.mxu0 0.0
        %514 = vmatprep.subr.mxu0 0.0
        %515 = vmatpush1.msra.mxu0 0.0
        %516 = vmatprep.subr.mxu0 0.0
        %517 = vmatpush1.msra.mxu0 0.0
        %518 = vmatprep.subr.mxu0 0.0
        %519 = vmatpush1.msra.mxu0 0.0
        %520 = vmatprep.subr.mxu0 0.0
        %521 = vmatpush1.msra.mxu0 0.0
        %522 = vmatprep.subr.mxu0 0.0
        %523 = vmatpush1.msra.mxu0 0.0
        %524 = vmatprep.subr.mxu0 0.0
        %525 = vmatpush1.msra.mxu0 0.0
        %526 = vmatprep.subr.mxu0 0.0
        %527 = vmatpush1.msra.mxu0 0.0
        %528 = vmatprep.subr.mxu0 0.0
        %529 = vmatpush1.msra.mxu0 0.0
        %530 = vmatprep.subr.mxu0 0.0
        %531 = vmatpush1.msra.mxu0 0.0
        %532 = vmatprep.subr.mxu0 0.0
        %533 = vmatpush1.msra.mxu0 0.0
        %534 = vmatprep.subr.mxu0 0.0
        %535 = vmatpush1.msra.mxu0 0.0
        %536 = vmatprep.subr.mxu0 0.0
        %537 = vmatpush1.msra.mxu0 0.0
        %538 = vmatprep.subr.mxu0 0.0
        %539 = vmatpush1.msra.mxu0 0.0
        %540 = vmatprep.subr.mxu0 0.0
        %541 = vmatpush1.msra.mxu0 0.0
        %542 = vmatprep.subr.mxu0 0.0
        %543 = vmatpush1.msra.mxu0 0.0
        %544 = vmatprep.subr.mxu0 0.0
        %545 = vmatpush1.msra.mxu0 0.0
        %546 = vmatprep.subr.mxu0 0.0
        %547 = vmatpush1.msra.mxu0 0.0
        %548 = vmatprep.subr.mxu0 0.0
        %549 = vmatpush1.msra.mxu0 0.0
        %550 = vmatprep.subr.mxu0 0.0
        %551 = vmatpush1.msra.mxu0 0.0
        %552 = vmatprep.subr.mxu0 0.0
        %553 = vmatpush1.msra.mxu0 0.0
        %554 = vmatprep.subr.mxu0 0.0
        %555 = vmatpush1.msra.mxu0 0.0
        %556 = vmatprep.subr.mxu0 0.0
        %557 = vmatpush1.msra.mxu0 0.0
        %558 = vmatprep.subr.mxu0 0.0
        %559 = vmatpush1.msra.mxu0 0.0
        %560 = vmatprep.subr.mxu0 0.0
        %561 = vmatpush1.msra.mxu0 0.0
        %562 = vmatprep.subr.mxu0 0.0
        %563 = vmatpush1.msra.mxu0 0.0
        %564 = vmatprep.subr.mxu0 0.0
        %565 = vmatpush1.msra.mxu0 0.0
        %566 = vmatprep.subr.mxu0 0.0
        %567 = vmatpush1.msra.mxu0 0.0
        %568 = vmatprep.subr.mxu0 0.0
        %569 = vmatpush1.msra.mxu0 0.0
        %570 = vmatprep.subr.mxu0 0.0
        %571 = vmatpush1.msra.mxu0 0.0
        %572 = vmatprep.mubr.f32.mxu0 0.0
        %573 = vmatmul.mubr.f32.gmra.mrb[0].mxu0 %v457
        %v574 = vpop.f32.mrb[0].mxu0
        %v575 = vadd.f32 %v453, %v574
        %v576 = vpop.f32.mrb[0].mxu0
        %577 = vmatprep.mubr.f32.mxu0 0.0
        %578 = vmatmul.mubr.f32.gmra.mrb[0].mxu0 %v460
        %v579 = vpop.f32.mrb[0].mxu0
        %v580 = vadd.f32 %v453, %v579
        %v581 = vpop.f32.mrb[0].mxu0
        %582 = vmatprep.mubr.f32.mxu0 0.0
        %583 = vmatmul.mubr.f32.gmra.mrb[0].mxu0 %v463
        %v584 = vpop.f32.mrb[0].mxu0
        %v585 = vadd.f32 %v453, %v584
        %v586 = vpop.f32.mrb[0].mxu0
        %587 = vmatprep.mubr.f32.mxu0 0.0
        %588 = vmatmul.mubr.f32.gmra.mrb[0].mxu0 %v466
        %v589 = vpop.f32.mrb[0].mxu0
        %v590 = vadd.f32 %v453, %v589
        %v591 = vpop.f32.mrb[0].mxu0
        %592 = vmatprep.mubr.f32.mxu0 0.0
        %593 = vmatmul.mubr.f32.gmra.mrb[0].mxu0 %v469
        %v594 = vpop.f32.mrb[0].mxu0
        %v595 = vadd.f32 %v453, %v594
        %v596 = vpop.f32.mrb[0].mxu0
        %597 = vmatprep.mubr.f32.mxu0 0.0
        %598 = vmatmul.mubr.f32.gmra.mrb[0].mxu0 %v472
        %v599 = vpop.f32.mrb[0].mxu0
        %v600 = vadd.f32 %v453, %v599
        %v601 = vpop.f32.mrb[0].mxu0
        %602 = vmatprep.mubr.f32.mxu0 0.0
        %603 = vmatmul.mubr.f32.gmra.mrb[0].mxu0 %v475
        %v604 = vpop.f32.mrb[0].mxu0
        %v605 = vadd.f32 %v453, %v604
        %v606 = vpop.f32.mrb[0].mxu0
        %607 = vmatprep.mubr.f32.mxu0 0.0
        %608 = vmatmul.mubr.f32.gmra.mrb[0].mxu0 %v478
        %v609 = vpop.f32.mrb[0].mxu0
        %v610 = vadd.f32 %v453, %v609
        %v611 = vpop.f32.mrb[0].mxu0
        %612 = vmatprep.mubr.f32.mxu0 0.0
        %613 = vmatmul.mubr.f32.gmra.mrb[0].mxu0 %v481
        %v614 = vpop.f32.mrb[0].mxu0
        %v615 = vadd.f32 %v453, %v614
        %v616 = vpop.f32.mrb[0].mxu0
        %617 = vmatprep.mubr.f32.mxu0 0.0
        %618 = vmatmul.mubr.f32.gmra.mrb[0].mxu0 %v484
        %v619 = vpop.f32.mrb[0].mxu0
        %v620 = vadd.f32 %v453, %v619
        %v621 = vpop.f32.mrb[0].mxu0
        %622 = vmatprep.mubr.f32.mxu0 0.0
        %623 = vmatmul.mubr.f32.gmra.mrb[0].mxu0 %v487
        %v624 = vpop.f32.mrb[0].mxu0
        %v625 = vadd.f32 %v453, %v624
        %v626 = vpop.f32.mrb[0].mxu0
        %627 = vmatprep.mubr.f32.mxu0 0.0
        %628 = vmatmul.mubr.f32.gmra.mrb[0].mxu0 %v490
        %v629 = vpop.f32.mrb[0].mxu0
        %v630 = vadd.f32 %v453, %v629
        %v631 = vpop.f32.mrb[0].mxu0
        %632 = vmatprep.mubr.f32.mxu0 0.0
        %633 = vmatmul.mubr.f32.gmra.mrb[0].mxu0 %v493
        %v634 = vpop.f32.mrb[0].mxu0
        %v635 = vadd.f32 %v453, %v634
        %v636 = vpop.f32.mrb[0].mxu0
        %637 = vmatprep.mubr.f32.mxu0 0.0
        %638 = vmatmul.mubr.f32.gmra.mrb[0].mxu0 %v496
        %v639 = vpop.f32.mrb[0].mxu0
        %v640 = vadd.f32 %v453, %v639
        %v641 = vpop.f32.mrb[0].mxu0
        %642 = vmatprep.mubr.f32.mxu0 0.0
        %643 = vmatmul.mubr.f32.gmra.mrb[0].mxu0 %v499
        %v644 = vpop.f32.mrb[0].mxu0
        %v645 = vadd.f32 %v453, %v644
        %v646 = vpop.f32.mrb[0].mxu0
        %647 = vmatprep.mubr.f32.mxu0 0.0
        %648 = vmatmul.mubr.f32.gmra.mrb[0].mxu0 %v502
        %v649 = vpop.f32.mrb[0].mxu0
        %v650 = vadd.f32 %v453, %v649
        %v651 = vpop.f32.mrb[0].mxu0
        %652 = vdwg.mxu0
        %v653 = vmax.f32 %v575, 0.0
        %v654 = vmax.f32 %v580, 0.0
        %v655 = vmax.f32 %v585, 0.0
        %v656 = vmax.f32 %v590, 0.0
        %v657 = vmax.f32 %v595, 0.0
        %v658 = vmax.f32 %v600, 0.0
        %v659 = vmax.f32 %v605, 0.0
        %v660 = vmax.f32 %v610, 0.0
        %v661 = vmax.f32 %v615, 0.0
        %v662 = vmax.f32 %v620, 0.0
        %v663 = vmax.f32 %v625, 0.0
        %v664 = vmax.f32 %v630, 0.0
        %v665 = vmax.f32 %v635, 0.0
        %v666 = vmax.f32 %v640, 0.0
        %v667 = vmax.f32 %v645, 0.0
        %v668 = vmax.f32 %v650, 0.0
        %v669 = vld [vmem:[#allocation2] sm:$0xff]
        %v670 = vadd.f32 %v653, %v654
        %v671 = vadd.f32 %v670, %v655
        %v672 = vadd.f32 %v671, %v656
        %v673 = vadd.f32 %v672, %v657
        %v674 = vadd.f32 %v673, %v658
        %v675 = vadd.f32 %v674, %v659
        %v676 = vadd.f32 %v675, %v660
        %v677 = vadd.f32 %v676, %v661
        %v678 = vadd.f32 %v677, %v662
        %v679 = vadd.f32 %v678, %v663
        %v680 = vadd.f32 %v679, %v664
        %v681 = vadd.f32 %v680, %v665
        %v682 = vadd.f32 %v681, %v666
        %v683 = vadd.f32 %v682, %v667
        %v684 = vadd.f32 %v683, %v668
        %v685 = vadd.f32 %v669, %v684
        %686 = vst [vmem:[#allocation2] sm:$0xff] %v685
        %p687 = scmp.eq.s32.totalorder %s30, 1
        // Predicated region
        $region69: #{tpu_custom_call.1} parent=63 // pred_check
          %p688 = pneg %p687
        $region70: #{tpu_custom_call.1} parent=63 // pred_check_branch
          %690 = sbr.rel (%p688) target = $region72
        $region71: #{tpu_custom_call.1} parent=63 // pred_region
          %v691 = vld [vmem:[#allocation2] sm:$0xff]
          %v692 = vrot.slane %v691, 4
          %v693 = vadd.f32 %v691, %v692
          %v694 = vrot.slane %v693, 2
          %v695 = vadd.f32 %v693, %v694
          %v696 = vrot.slane %v695, 1
          %v697 = vadd.f32 %v695, %v696
          %v698 = vmul.f32 %v697, 0.00390625
          %v699 = vld [vmem:[%s425] sm:$0x1]
          %v700 = vld [vmem:[%s4] sm:$0xff]
          %v701 = vld [vmem:[%s4 + $0x8] sm:$0xff]
          %v702 = vld [vmem:[%s4 + $0x10] sm:$0xff]
          %v703 = vld [vmem:[%s4 + $0x18] sm:$0xff]
          %v704 = vld [vmem:[%s4 + $0x20] sm:$0xff]
          %v705 = vld [vmem:[%s4 + $0x28] sm:$0xff]
          %v706 = vld [vmem:[%s4 + $0x30] sm:$0xff]
          %v707 = vld [vmem:[%s4 + $0x38] sm:$0xff]
          %v708 = vld [vmem:[%s4 + $0x40] sm:$0xff]
          %v709 = vld [vmem:[%s4 + $0x48] sm:$0xff]
          %v710 = vld [vmem:[%s4 + $0x50] sm:$0xff]
          %v711 = vld [vmem:[%s4 + $0x58] sm:$0xff]
          %v712 = vld [vmem:[%s4 + $0x60] sm:$0xff]
          %v713 = vld [vmem:[%s4 + $0x68] sm:$0xff]
          %v714 = vld [vmem:[%s4 + $0x70] sm:$0xff]
          %v715 = vld [vmem:[%s4 + $0x78] sm:$0xff]
          %v716 = vld [vmem:[%s5] sm:$0xff]
          %v717 = vld [vmem:[%s5 + $0x8] sm:$0xff]
          %vm718 = vcmask 130048
          %v720 = vsel %vm718, %v699, 0
          %722 = vmatprep.subr.mxu0 0.0
          %723 = vmatpush1.msra.mxu0 %v716
          %724 = vmatprep.subr.mxu0 0.0
          %725 = vmatpush1.msra.mxu0 %v717
          %726 = vmatprep.subr.mxu0 0.0
          %727 = vmatpush1.msra.mxu0 0.0
          %728 = vmatprep.subr.mxu0 0.0
          %729 = vmatpush1.msra.mxu0 0.0
          %730 = vmatprep.subr.mxu0 0.0
          %731 = vmatpush1.msra.mxu0 0.0
          %732 = vmatprep.subr.mxu0 0.0
          %733 = vmatpush1.msra.mxu0 0.0
          %734 = vmatprep.subr.mxu0 0.0
          %735 = vmatpush1.msra.mxu0 0.0
          %736 = vmatprep.subr.mxu0 0.0
          %737 = vmatpush1.msra.mxu0 0.0
          %738 = vmatprep.subr.mxu0 0.0
          %739 = vmatpush1.msra.mxu0 0.0
          %740 = vmatprep.subr.mxu0 0.0
          %741 = vmatpush1.msra.mxu0 0.0
          %742 = vmatprep.subr.mxu0 0.0
          %743 = vmatpush1.msra.mxu0 0.0
          %744 = vmatprep.subr.mxu0 0.0
          %745 = vmatpush1.msra.mxu0 0.0
          %746 = vmatprep.subr.mxu0 0.0
          %747 = vmatpush1.msra.mxu0 0.0
          %748 = vmatprep.subr.mxu0 0.0
          %749 = vmatpush1.msra.mxu0 0.0
          %750 = vmatprep.subr.mxu0 0.0
          %751 = vmatpush1.msra.mxu0 0.0
          %752 = vmatprep.subr.mxu0 0.0
          %753 = vmatpush1.msra.mxu0 0.0
          %754 = vmatprep.subr.mxu0 0.0
          %755 = vmatpush1.msra.mxu0 0.0
          %756 = vmatprep.subr.mxu0 0.0
          %757 = vmatpush1.msra.mxu0 0.0
          %758 = vmatprep.subr.mxu0 0.0
          %759 = vmatpush1.msra.mxu0 0.0
          %760 = vmatprep.subr.mxu0 0.0
          %761 = vmatpush1.msra.mxu0 0.0
          %762 = vmatprep.subr.mxu0 0.0
          %763 = vmatpush1.msra.mxu0 0.0
          %764 = vmatprep.subr.mxu0 0.0
          %765 = vmatpush1.msra.mxu0 0.0
          %766 = vmatprep.subr.mxu0 0.0
          %767 = vmatpush1.msra.mxu0 0.0
          %768 = vmatprep.subr.mxu0 0.0
          %769 = vmatpush1.msra.mxu0 0.0
          %770 = vmatprep.subr.mxu0 0.0
          %771 = vmatpush1.msra.mxu0 0.0
          %772 = vmatprep.subr.mxu0 0.0
          %773 = vmatpush1.msra.mxu0 0.0
          %774 = vmatprep.subr.mxu0 0.0
          %775 = vmatpush1.msra.mxu0 0.0
          %776 = vmatprep.subr.mxu0 0.0
          %777 = vmatpush1.msra.mxu0 0.0
          %778 = vmatprep.subr.mxu0 0.0
          %779 = vmatpush1.msra.mxu0 0.0
          %780 = vmatprep.subr.mxu0 0.0
          %781 = vmatpush1.msra.mxu0 0.0
          %782 = vmatprep.subr.mxu0 0.0
          %783 = vmatpush1.msra.mxu0 0.0
          %784 = vmatprep.subr.mxu0 0.0
          %785 = vmatpush1.msra.mxu0 0.0
          %786 = vmatprep.mubr.f32.mxu0 0.0
          %787 = vmatmul.mubr.f32.gmra.mrb[0].mxu0 %v720
          %v788 = vpop.f32.mrb[0].mxu0
          %v789 = vadd.f32 0.0, %v788
          %v790 = vpop.f32.mrb[0].mxu0
          %791 = vdwg.mxu0
          %792 = vmatprep.subr.mxu0 0.0
          %793 = vmatpush1.msra.mxu0 %v700
          %794 = vmatprep.subr.mxu0 0.0
          %795 = vmatpush1.msra.mxu0 %v701
          %796 = vmatprep.subr.mxu0 0.0
          %797 = vmatpush1.msra.mxu0 %v702
          %798 = vmatprep.subr.mxu0 0.0
          %799 = vmatpush1.msra.mxu0 %v703
          %800 = vmatprep.subr.mxu0 0.0
          %801 = vmatpush1.msra.mxu0 %v704
          %802 = vmatprep.subr.mxu0 0.0
          %803 = vmatpush1.msra.mxu0 %v705
          %804 = vmatprep.subr.mxu0 0.0
          %805 = vmatpush1.msra.mxu0 %v706
          %806 = vmatprep.subr.mxu0 0.0
          %807 = vmatpush1.msra.mxu0 %v707
          %808 = vmatprep.subr.mxu0 0.0
          %809 = vmatpush1.msra.mxu0 %v708
          %810 = vmatprep.subr.mxu0 0.0
          %811 = vmatpush1.msra.mxu0 %v709
          %812 = vmatprep.subr.mxu0 0.0
          %813 = vmatpush1.msra.mxu0 %v710
          %814 = vmatprep.subr.mxu0 0.0
          %815 = vmatpush1.msra.mxu0 %v711
          %816 = vmatprep.subr.mxu0 0.0
          %817 = vmatpush1.msra.mxu0 %v712
          %818 = vmatprep.subr.mxu0 0.0
          %819 = vmatpush1.msra.mxu0 %v713
          %820 = vmatprep.subr.mxu0 0.0
          %821 = vmatpush1.msra.mxu0 %v714
          %822 = vmatprep.subr.mxu0 0.0
          %823 = vmatpush1.msra.mxu0 %v715
          %824 = vmatprep.subr.mxu0 0.0
          %825 = vmatpush1.msra.mxu0 0.0
          %826 = vmatprep.subr.mxu0 0.0
          %827 = vmatpush1.msra.mxu0 0.0
          %828 = vmatprep.subr.mxu0 0.0
          %829 = vmatpush1.msra.mxu0 0.0
          %830 = vmatprep.subr.mxu0 0.0
          %831 = vmatpush1.msra.mxu0 0.0
          %832 = vmatprep.subr.mxu0 0.0
          %833 = vmatpush1.msra.mxu0 0.0
          %834 = vmatprep.subr.mxu0 0.0
          %835 = vmatpush1.msra.mxu0 0.0
          %836 = vmatprep.subr.mxu0 0.0
          %837 = vmatpush1.msra.mxu0 0.0
          %838 = vmatprep.subr.mxu0 0.0
          %839 = vmatpush1.msra.mxu0 0.0
          %840 = vmatprep.subr.mxu0 0.0
          %841 = vmatpush1.msra.mxu0 0.0
          %842 = vmatprep.subr.mxu0 0.0
          %843 = vmatpush1.msra.mxu0 0.0
          %844 = vmatprep.subr.mxu0 0.0
          %845 = vmatpush1.msra.mxu0 0.0
          %846 = vmatprep.subr.mxu0 0.0
          %847 = vmatpush1.msra.mxu0 0.0
          %848 = vmatprep.subr.mxu0 0.0
          %849 = vmatpush1.msra.mxu0 0.0
          %850 = vmatprep.subr.mxu0 0.0
          %851 = vmatpush1.msra.mxu0 0.0
          %852 = vmatprep.subr.mxu0 0.0
          %853 = vmatpush1.msra.mxu0 0.0
          %854 = vmatprep.subr.mxu0 0.0
          %855 = vmatpush1.msra.mxu0 0.0
          %856 = vmatprep.mubr.f32.mxu0 0.0
          %857 = vmatmul.mubr.f32.gmra.mrb[0].mxu0 %v698
          %v858 = vpop.f32.mrb[0].mxu0
          %v859 = vadd.f32 %v789, %v858
          %v860 = vpop.f32.mrb[0].mxu0
          %861 = vdwg.mxu0
          %v862 = vld [vmem:[%s6] sm:$0x1]
          %v863 = vadd.f32 %v859, %v862
          %v864 = vmax.f32 %v863, 0.0
          %v865 = vld [vmem:[%s7] sm:$0xff]
          %v866 = vld [vmem:[%s7 + $0x8] sm:$0xff]
          %v867 = vld [vmem:[%s7 + $0x10] sm:$0xff]
          %v868 = vld [vmem:[%s7 + $0x18] sm:$0xff]
          %v869 = vld [vmem:[%s7 + $0x20] sm:$0xff]
          %v870 = vld [vmem:[%s7 + $0x28] sm:$0xff]
          %v871 = vld [vmem:[%s7 + $0x30] sm:$0xff]
          %v872 = vld [vmem:[%s7 + $0x38] sm:$0xff]
          %v873 = vld [vmem:[%s7 + $0x40] sm:$0xff]
          %v874 = vld [vmem:[%s7 + $0x48] sm:$0xff]
          %v875 = vld [vmem:[%s7 + $0x50] sm:$0xff]
          %v876 = vld [vmem:[%s7 + $0x58] sm:$0xff]
          %v877 = vld [vmem:[%s7 + $0x60] sm:$0xff]
          %v878 = vld [vmem:[%s7 + $0x68] sm:$0xff]
          %v879 = vld [vmem:[%s7 + $0x70] sm:$0xff]
          %v880 = vld [vmem:[%s7 + $0x78] sm:$0xff]
          %v881 = vld [vmem:[%s8] sm:$0x1]
          %882 = vmatprep.subr.mxu0 0.0
          %883 = vmatpush1.msra.mxu0 %v865
          %884 = vmatprep.subr.mxu0 0.0
          %885 = vmatpush1.msra.mxu0 %v866
          %886 = vmatprep.subr.mxu0 0.0
          %887 = vmatpush1.msra.mxu0 %v867
          %888 = vmatprep.subr.mxu0 0.0
          %889 = vmatpush1.msra.mxu0 %v868
          %890 = vmatprep.subr.mxu0 0.0
          %891 = vmatpush1.msra.mxu0 %v869
          %892 = vmatprep.subr.mxu0 0.0
          %893 = vmatpush1.msra.mxu0 %v870
          %894 = vmatprep.subr.mxu0 0.0
          %895 = vmatpush1.msra.mxu0 %v871
          %896 = vmatprep.subr.mxu0 0.0
          %897 = vmatpush1.msra.mxu0 %v872
          %898 = vmatprep.subr.mxu0 0.0
          %899 = vmatpush1.msra.mxu0 %v873
          %900 = vmatprep.subr.mxu0 0.0
          %901 = vmatpush1.msra.mxu0 %v874
          %902 = vmatprep.subr.mxu0 0.0
          %903 = vmatpush1.msra.mxu0 %v875
          %904 = vmatprep.subr.mxu0 0.0
          %905 = vmatpush1.msra.mxu0 %v876
          %906 = vmatprep.subr.mxu0 0.0
          %907 = vmatpush1.msra.mxu0 %v877
          %908 = vmatprep.subr.mxu0 0.0
          %909 = vmatpush1.msra.mxu0 %v878
          %910 = vmatprep.subr.mxu0 0.0
          %911 = vmatpush1.msra.mxu0 %v879
          %912 = vmatprep.subr.mxu0 0.0
          %913 = vmatpush1.msra.mxu0 %v880
          %914 = vmatprep.subr.mxu0 0.0
          %915 = vmatpush1.msra.mxu0 0.0
          %916 = vmatprep.subr.mxu0 0.0
          %917 = vmatpush1.msra.mxu0 0.0
          %918 = vmatprep.subr.mxu0 0.0
          %919 = vmatpush1.msra.mxu0 0.0
          %920 = vmatprep.subr.mxu0 0.0
          %921 = vmatpush1.msra.mxu0 0.0
          %922 = vmatprep.subr.mxu0 0.0
          %923 = vmatpush1.msra.mxu0 0.0
          %924 = vmatprep.subr.mxu0 0.0
          %925 = vmatpush1.msra.mxu0 0.0
          %926 = vmatprep.subr.mxu0 0.0
          %927 = vmatpush1.msra.mxu0 0.0
          %928 = vmatprep.subr.mxu0 0.0
          %929 = vmatpush1.msra.mxu0 0.0
          %930 = vmatprep.subr.mxu0 0.0
          %931 = vmatpush1.msra.mxu0 0.0
          %932 = vmatprep.subr.mxu0 0.0
          %933 = vmatpush1.msra.mxu0 0.0
          %934 = vmatprep.subr.mxu0 0.0
          %935 = vmatpush1.msra.mxu0 0.0
          %936 = vmatprep.subr.mxu0 0.0
          %937 = vmatpush1.msra.mxu0 0.0
          %938 = vmatprep.subr.mxu0 0.0
          %939 = vmatpush1.msra.mxu0 0.0
          %940 = vmatprep.subr.mxu0 0.0
          %941 = vmatpush1.msra.mxu0 0.0
          %942 = vmatprep.subr.mxu0 0.0
          %943 = vmatpush1.msra.mxu0 0.0
          %944 = vmatprep.subr.mxu0 0.0
          %945 = vmatpush1.msra.mxu0 0.0
          %946 = vmatprep.mubr.f32.mxu0 0.0
          %947 = vmatmul.mubr.f32.gmra.mrb[0].mxu0 %v864
          %v948 = vpop.f32.mrb[0].mxu0
          %v949 = vadd.f32 %v881, %v948
          %v950 = vpop.f32.mrb[0].mxu0
          %951 = vdwg.mxu0
          %v952 = vmax.f32 %v949, 0.0
          %v953 = vld [vmem:[%s9] sm:$0xff]
          %v954 = vld [vmem:[%s9 + $0x8] sm:$0xff]
          %v955 = vld [vmem:[%s9 + $0x10] sm:$0xff]
          %v956 = vld [vmem:[%s9 + $0x18] sm:$0xff]
          %v957 = vld [vmem:[%s9 + $0x20] sm:$0xff]
          %v958 = vld [vmem:[%s9 + $0x28] sm:$0xff]
          %v959 = vld [vmem:[%s9 + $0x30] sm:$0xff]
          %v960 = vld [vmem:[%s9 + $0x38] sm:$0xff]
          %v961 = vld [vmem:[%s10] sm:$0x1]
          %vm962 = vcmask 523264
          %v964 = vsel %vm962, %v952, 0
          %966 = vmatprep.subr.mxu0 0.0
          %967 = vmatpush1.msra.mxu0 %v953
          %968 = vmatprep.subr.mxu0 0.0
          %969 = vmatpush1.msra.mxu0 %v954
          %970 = vmatprep.subr.mxu0 0.0
          %971 = vmatpush1.msra.mxu0 %v955
          %972 = vmatprep.subr.mxu0 0.0
          %973 = vmatpush1.msra.mxu0 %v956
          %974 = vmatprep.subr.mxu0 0.0
          %975 = vmatpush1.msra.mxu0 %v957
          %976 = vmatprep.subr.mxu0 0.0
          %977 = vmatpush1.msra.mxu0 %v958
          %978 = vmatprep.subr.mxu0 0.0
          %979 = vmatpush1.msra.mxu0 %v959
          %980 = vmatprep.subr.mxu0 0.0
          %981 = vmatpush1.msra.mxu0 %v960
          %982 = vmatprep.subr.mxu0 0.0
          %983 = vmatpush1.msra.mxu0 0.0
          %984 = vmatprep.subr.mxu0 0.0
          %985 = vmatpush1.msra.mxu0 0.0
          %986 = vmatprep.subr.mxu0 0.0
          %987 = vmatpush1.msra.mxu0 0.0
          %988 = vmatprep.subr.mxu0 0.0
          %989 = vmatpush1.msra.mxu0 0.0
          %990 = vmatprep.subr.mxu0 0.0
          %991 = vmatpush1.msra.mxu0 0.0
          %992 = vmatprep.subr.mxu0 0.0
          %993 = vmatpush1.msra.mxu0 0.0
          %994 = vmatprep.subr.mxu0 0.0
          %995 = vmatpush1.msra.mxu0 0.0
          %996 = vmatprep.subr.mxu0 0.0
          %997 = vmatpush1.msra.mxu0 0.0
          %998 = vmatprep.subr.mxu0 0.0
          %999 = vmatpush1.msra.mxu0 0.0
          %1000 = vmatprep.subr.mxu0 0.0
          %1001 = vmatpush1.msra.mxu0 0.0
          %1002 = vmatprep.subr.mxu0 0.0
          %1003 = vmatpush1.msra.mxu0 0.0
          %1004 = vmatprep.subr.mxu0 0.0
          %1005 = vmatpush1.msra.mxu0 0.0
          %1006 = vmatprep.subr.mxu0 0.0
          %1007 = vmatpush1.msra.mxu0 0.0
          %1008 = vmatprep.subr.mxu0 0.0
          %1009 = vmatpush1.msra.mxu0 0.0
          %1010 = vmatprep.subr.mxu0 0.0
          %1011 = vmatpush1.msra.mxu0 0.0
          %1012 = vmatprep.subr.mxu0 0.0
          %1013 = vmatpush1.msra.mxu0 0.0
          %1014 = vmatprep.subr.mxu0 0.0
          %1015 = vmatpush1.msra.mxu0 0.0
          %1016 = vmatprep.subr.mxu0 0.0
          %1017 = vmatpush1.msra.mxu0 0.0
          %1018 = vmatprep.subr.mxu0 0.0
          %1019 = vmatpush1.msra.mxu0 0.0
          %1020 = vmatprep.subr.mxu0 0.0
          %1021 = vmatpush1.msra.mxu0 0.0
          %1022 = vmatprep.subr.mxu0 0.0
          %1023 = vmatpush1.msra.mxu0 0.0
          %1024 = vmatprep.subr.mxu0 0.0
          %1025 = vmatpush1.msra.mxu0 0.0
          %1026 = vmatprep.subr.mxu0 0.0
          %1027 = vmatpush1.msra.mxu0 0.0
          %1028 = vmatprep.subr.mxu0 0.0
          %1029 = vmatpush1.msra.mxu0 0.0
          %1030 = vmatprep.mubr.f32.mxu0 0.0
          %1031 = vmatmul.mubr.f32.gmra.mrb[0].mxu0 %v964
          %v1032 = vpop.f32.mrb[0].mxu0
          %v1033 = vadd.f32 %v961, %v1032
          %v1034 = vpop.f32.mrb[0].mxu0
          %1035 = vdwg.mxu0
          %vm1036 = vcmask 8192
          %1037 = vst.msk [vmem:[%s412] sm:$0x1] %vm1036, %v1033
        $region72: #{tpu_custom_call.1} parent=63 // pred_fallthru
          _
        %s1038 = sand.u32 %s288, 1
        %s1039 = scalar_lea.sflag [#allocation4], %s1038
        %s1040 = sand.u32 %s288, 1
        %s1041 = scalar_lea.vmem [#allocation3], %s1040
        // Predicated region
        $region73: #{tpu_custom_call.1} parent=63 // pred_check
          %p1042 = pneg %p298
        $region74: #{tpu_custom_call.1} parent=63 // pred_check_branch
          %1044 = sbr.rel (%p1042) target = $region76
        $region75: #{tpu_custom_call.1} parent=63 // pred_region
          %s1046 = ssub.s32 16, 16
          %1047 = vsyncadd %s1039, %s1046
          %s1048 = smul.addr %s29, 16
          %s1049 = scalar_lea.hbm %s11, %s1048
          %s1051 = sshll.u32 %s1041, 4
          %s1052 = int_to_ptr.vmem [resolvable:$true] %s1051
          %1054 = dma.vmem_to_hbm [thread:$0]  %s1052, 16, %s1049, %s1039
        $region76: #{tpu_custom_call.1} parent=63 // pred_fallthru
          _
      $region64: #{tpu_custom_call.1} parent=5 // pred_fallthru
        _
      %p1055 = scmp.le.s32.totalorder 2, %s20
      // Predicated region
      $region77: #{tpu_custom_call.1} parent=5 // pred_check
        %p1056 = pneg %p1055
      $region78: #{tpu_custom_call.1} parent=5 // pred_check_branch
        %1058 = sbr.rel (%p1056) target = $region80
      $region79: #{tpu_custom_call.1} parent=5 // pred_region
        %s1059 = ssub.s32 %s20, 2
        // Predicated region
        $region81: #{tpu_custom_call.1} parent=79 // pred_check
          %p1060 = pneg %p304
        $region82: #{tpu_custom_call.1} parent=79 // pred_check_branch
          %1062 = sbr.rel (%p1060) target = $region84
        $region83: #{tpu_custom_call.1} parent=79 // pred_region
          %s1063 = sand.u32 %s289, 1
          %s1064 = scalar_lea.sflag [#allocation4], %s1063
          %s1065 = sand.u32 %s289, 1
          %s1066 = scalar_lea.vmem [#allocation3], %s1065
          %1067 = dma.done %s1064, 16
        $region84: #{tpu_custom_call.1} parent=79 // pred_fallthru
          _
      $region80: #{tpu_custom_call.1} parent=5 // pred_fallthru
        _
    $region6: #{tpu_custom_call.1} parent=1 // loop_footer
      %s24 = sadd.s32 1, %s20
    $region7: #{tpu_custom_call.1} parent=1 // loop_footer_branch
      %19 = sbr.rel target = $region3
    $region8: #{tpu_custom_call.1} parent=1 // loop_exit
      _
    %1068 = vsyncpa [#allocation4], 1
    %s1069 = scalar_lea.sflag [#allocation4], 1
    %1070 = vsyncpa %s1069, 1

</llo_original>
